<compile_context>
chip_gen: v7x
topology: tpu7x:2x2x1
jax: 0.10.0
libtpu: 0.0.40
codegen_flags: <defaults>
</compile_context>

<pallas_src>
import math

import jax
import jax.numpy as jnp
from jax.experimental import pallas as pl
from jax.experimental.pallas import tpu as pltpu


def _round_up(x, m):
    return ((x + m - 1) // m) * m


def _make_kernel(fold):
    def kernel(h_ref, mem_ts_ref, ts_ref, ew_ref, c_ref, o_ref):
        h = h_ref[...].astype(jnp.float32)          # (tile, lanes)
        ts = ts_ref[...]                            # (tile, fold) f32
        mts = mem_ts_ref[...]                       # (tile, fold) f32
        td = (ts - mts) / (ts + 1.0)                # (tile, fold)

        if fold == 1:
            # Linear(1, D): keep as a VPU broadcast FMA (K=1 MXU matmul would
            # waste the systolic array for no gain).
            scaled = td * ew_ref[...]               # (tile,1)*(1,lanes)
        else:
            # Expand each per-row scalar across its D-wide lane group via a
            # tiny (tile, fold) x (fold, lanes) matmul -- MXU is idle, so this
            # is free filler and keeps the VPU for the final FMA.
            scaled = jnp.dot(td, ew_ref[...],
                             preferred_element_type=jnp.float32)

        o_ref[...] = (h * (scaled + c_ref[...])).astype(o_ref.dtype)

    return kernel


def jodie_time_embedding(h, mem_ts, ts, weight, bias, *, tile_rows=4096):
    """JODIE time embedding forward.

    h:      [N, D] node features (f32 or bf16; output matches h.dtype)
    mem_ts: [N]    memory timestamps
    ts:     [N]    current timestamps
    weight: [D, 1] PyTorch Linear(1, D) weight
    bias:   [D]    PyTorch Linear(1, D) bias
    """
    N, D = h.shape
    out_dtype = h.dtype
    f32 = jnp.float32

    # Lane-dense fold: smallest fold making fold*D a multiple of 128.  Only
    # applied when the (N, D)->(ns, lanes) reshape is metadata-only
    # (N % fold == 0) and lanes stay small enough to be worth it.
    fold = 128 // math.gcd(D, 128)
    lanes = fold * D
    if fold == 1 or lanes > 512 or N % fold != 0:
        fold, lanes = 1, D
    ns = N // fold

    # Metadata-only reshapes (row-major contiguous); h stays in native dtype.
    h2 = h.reshape(ns, lanes)
    ts2 = ts.astype(f32).reshape(ns, fold)
    mts2 = mem_ts.astype(f32).reshape(ns, fold)

    # Hoisted parameter tensors (O(fold*lanes), built once).
    w = weight.astype(f32).reshape(D)
    b = bias.astype(f32).reshape(D)
    if fold == 1:
        ew = w.reshape(1, D)                                      # (1, lanes)
    else:
        w_tiled = jnp.tile(w, (fold,)).reshape(1, lanes)
        grp = (jnp.arange(lanes, dtype=jnp.int32) // D).reshape(1, lanes)
        sel = jnp.arange(fold, dtype=jnp.int32).reshape(fold, 1) == grp
        ew = jnp.where(sel, w_tiled, 0.0)                         # (fold, lanes)
    c = (1.0 + jnp.tile(b, (fold,))).reshape(1, lanes)            # (1, lanes)

    # Tile selection: as large as possible while double-buffered in+out blocks
    # stay under ~12 MiB (v5e 16 MiB scoped VMEM; v7x 32 MiB scoped).
    itm = jnp.dtype(out_dtype).itemsize
    row_bytes = lanes * 2 * itm + fold * 8          # h in + out + ts/mem_ts
    budget = 6 * 1024 * 1024                        # per-step (x2 for dbl-buf)
    row_mult = 8 if itm >= 4 else (16 if itm == 2 else 32)
    tile = max(row_mult, (min(tile_rows, budget // row_bytes)
                          // row_mult) * row_mult)
    tile = min(tile, _round_up(ns, row_mult))

    grid = (pl.cdiv(ns, tile),)                     # partial last block OK

    out = pl.pallas_call(
        _make_kernel(fold),
        out_shape=jax.ShapeDtypeStruct((ns, lanes), out_dtype),
        grid=grid,
        in_specs=[
            pl.BlockSpec((tile, lanes), lambda i: (i, 0)),   # h
            pl.BlockSpec((tile, fold), lambda i: (i, 0)),    # mem_ts
            pl.BlockSpec((tile, fold), lambda i: (i, 0)),    # ts
            pl.BlockSpec((fold, lanes), lambda i: (0, 0)),   # expand_w
            pl.BlockSpec((1, lanes), lambda i: (0, 0)),      # 1 + bias
        ],
        out_specs=pl.BlockSpec((tile, lanes), lambda i: (i, 0)),
        compiler_params=pltpu.CompilerParams(
            dimension_semantics=("parallel",)),
    )(h2, mts2, ts2, ew, c)

    return out.reshape(N, D)                        # metadata-only


def _reference(h, mem_ts, ts, weight, bias):
    time_diff = (ts - mem_ts) / (ts + 1.0)                            # [N]
    emb = time_diff[:, None] * weight.reshape(1, -1) + bias.reshape(1, -1)
    return h.astype(jnp.float32) * (1.0 + emb)


def _run_case(key, N, dim_out, h_dtype=jnp.float32, tol=1e-5):
    k_h, k_mts, k_ts, k_w, k_b = jax.random.split(key, 5)
    h = jax.random.normal(k_h, (N, dim_out), dtype=jnp.float32).astype(h_dtype)
    mem_ts = jax.random.uniform(k_mts, (N,), dtype=jnp.float32,
                                minval=0.0, maxval=10.0)
    ts = mem_ts + jax.random.uniform(k_ts, (N,), dtype=jnp.float32,
                                     minval=0.0, maxval=5.0)
    # NormalLinear(1, dim_out): weight [dim_out, 1], bias [dim_out], ~N(0, 1)
    stdv = 1.0 / math.sqrt(1.0)
    weight = stdv * jax.random.normal(k_w, (dim_out, 1), dtype=jnp.float32)
    bias = stdv * jax.random.normal(k_b, (dim_out,), dtype=jnp.float32)

    out = jax.block_until_ready(jodie_time_embedding(h, mem_ts, ts, weight, bias))
    ref = _reference(h, mem_ts, ts, weight, bias)
    assert out.shape == (N, dim_out)
    assert out.dtype == h_dtype
    assert jnp.allclose(out.astype(jnp.float32), ref, atol=tol, rtol=tol), (
        f"mismatch vs reference for N={N}, D={dim_out}, dtype={h_dtype}")


if __name__ == "__main__":
    key = jax.random.PRNGKey(0)
    k1, k2, k3, k4 = jax.random.split(key, 4)

    # Small demo shape (lane-dense fold path: D=32 -> fold=4, zero-copy).
    _run_case(k1, N=8, dim_out=32)
    # Ragged N, D multiple of 128 (fold=1, partial last block, zero-copy).
    _run_case(k2, N=37, dim_out=128)
    # Non-power-of-two D (generalized fold: D=48 -> fold=8, lanes=384).
    _run_case(k3, N=24, dim_out=48)
    # Native bf16 h (no wrapper upcast; looser tolerance is expected precision).
    _run_case(k4, N=16, dim_out=32, h_dtype=jnp.bfloat16, tol=3e-2)

    print("KERNEL_OK")
</pallas_src>

<mosaic_0001>
module attributes {stable_mosaic.version = 11 : i64} {
  func.func @kernel(%arg0: i32, %arg1: memref<8x128xf32, #tpu.memory_space<vmem>>, %arg2: memref<8x4xf32, #tpu.memory_space<vmem>>, %arg3: memref<8x4xf32, #tpu.memory_space<vmem>>, %arg4: memref<4x128xf32, #tpu.memory_space<vmem>>, %arg5: memref<1x128xf32, #tpu.memory_space<vmem>>, %arg6: memref<8x128xf32, #tpu.memory_space<vmem>>) attributes {dimension_semantics = [#tpu.dimension_semantics<parallel>], iteration_bounds = array<i64: 1>, scalar_prefetch = 0 : i64, scratch_operands = 0 : i64, tpu.core_type = #tpu.core_type<tc>, window_params = [{transform_indices = @transform_0, window_bounds = array<i64: 8, 128>}, {transform_indices = @transform_1, window_bounds = array<i64: 8, 4>}, {transform_indices = @transform_2, window_bounds = array<i64: 8, 4>}, {pipeline_mode = #tpu.pipeline_mode<synchronous>, transform_indices = @transform_3, window_bounds = array<i64: 4, 128>}, {pipeline_mode = #tpu.pipeline_mode<synchronous>, transform_indices = @transform_4, window_bounds = array<i64: 1, 128>}, {transform_indices = @transform_5, window_bounds = array<i64: 8, 128>}]} {
    %c0 = arith.constant 0 : index
    %c0_0 = arith.constant 0 : index
    %0 = vector.load %arg1[%c0, %c0_0] : memref<8x128xf32, #tpu.memory_space<vmem>>, vector<8x128xf32>
    %c0_1 = arith.constant 0 : index
    %c0_2 = arith.constant 0 : index
    %1 = vector.load %arg3[%c0_1, %c0_2] : memref<8x4xf32, #tpu.memory_space<vmem>>, vector<8x4xf32>
    %c0_3 = arith.constant 0 : index
    %c0_4 = arith.constant 0 : index
    %2 = vector.load %arg2[%c0_3, %c0_4] : memref<8x4xf32, #tpu.memory_space<vmem>>, vector<8x4xf32>
    %3 = arith.subf %1, %2 : vector<8x4xf32>
    %cst = arith.constant 1.000000e+00 : f32
    %4 = vector.broadcast %cst : f32 to vector<8x4xf32>
    %5 = arith.addf %1, %4 : vector<8x4xf32>
    %6 = arith.divf %3, %5 : vector<8x4xf32>
    %c0_5 = arith.constant 0 : index
    %c0_6 = arith.constant 0 : index
    %7 = vector.load %arg4[%c0_5, %c0_6] : memref<4x128xf32, #tpu.memory_space<vmem>>, vector<4x128xf32>
    %cst_7 = arith.constant dense<0.000000e+00> : vector<8x128xf32>
    %8 = tpu.matmul %6, %7, %cst_7 {dimension_numbers = #tpu.dot_dimension_numbers<[1], [0], [0], [1], [0, 0, 1, 1], [], []>} : vector<8x4xf32>, vector<4x128xf32>, vector<8x128xf32> -> vector<8x128xf32>
    %c0_8 = arith.constant 0 : index
    %c0_9 = arith.constant 0 : index
    %9 = vector.load %arg5[%c0_8, %c0_9] : memref<1x128xf32, #tpu.memory_space<vmem>>, vector<1x128xf32>
    %10 = vector.broadcast %9 : vector<1x128xf32> to vector<8x128xf32>
    %11 = arith.addf %8, %10 : vector<8x128xf32>
    %12 = arith.mulf %0, %11 : vector<8x128xf32>
    %c0_10 = arith.constant 0 : index
    %c0_11 = arith.constant 0 : index
    %13 = vector.load %arg6[%c0_10, %c0_11] : memref<8x128xf32, #tpu.memory_space<vmem>>, vector<8x128xf32>
    tpu.vector_store %arg6[%c0_10, %c0_11], %12 {strides = array<i32>} : memref<8x128xf32, #tpu.memory_space<vmem>>, vector<8x128xf32>,
    return
  }
  func.func @transform_0(%arg0: i32) -> (i32, i32) {
    %c0_i32 = arith.constant 0 : i32
    %c0_i32_0 = arith.constant 0 : i32
    return %arg0, %c0_i32 : i32, i32
  }
  func.func @transform_1(%arg0: i32) -> (i32, i32) {
    %c0_i32 = arith.constant 0 : i32
    %c0_i32_0 = arith.constant 0 : i32
    return %arg0, %c0_i32 : i32, i32
  }
  func.func @transform_2(%arg0: i32) -> (i32, i32) {
    %c0_i32 = arith.constant 0 : i32
    %c0_i32_0 = arith.constant 0 : i32
    return %arg0, %c0_i32 : i32, i32
  }
  func.func @transform_3(%arg0: i32) -> (i32, i32) {
    %c0_i32 = arith.constant 0 : i32
    %c0_i32_0 = arith.constant 0 : i32
    %c0_i32_1 = arith.constant 0 : i32
    return %c0_i32, %c0_i32_0 : i32, i32
  }
  func.func @transform_4(%arg0: i32) -> (i32, i32) {
    %c0_i32 = arith.constant 0 : i32
    %c0_i32_0 = arith.constant 0 : i32
    %c0_i32_1 = arith.constant 0 : i32
    return %c0_i32, %c0_i32_0 : i32, i32
  }
  func.func @transform_5(%arg0: i32) -> (i32, i32) {
    %c0_i32 = arith.constant 0 : i32
    %c0_i32_0 = arith.constant 0 : i32
    return %arg0, %c0_i32 : i32, i32
  }
}

</mosaic_0001>

<llo_original>
// kernel: tpu_custom_call.1
$region0: #{tpu_custom_call.1}
  #allocation0 [shape = 'u32[]', space=smem, size = 0x4, offset = 0x4, fixed_abs, tag = 'smem constant byte address 0x4 - core index']
  #allocation1 [shape = 'u32[144,128]{1,0:T(1,128)}', space=vmem, size = 0x12000, scoped, tag = 'internal scratch']
  %s0 = inlined_call_operand.hbm [shape: f32[2,128], index: 0, kind: input, shape index: {}]
  %s1 = inlined_call_operand.vmem [shape: f32[2,4], index: 1, kind: input, shape index: {}]
  %s2 = inlined_call_operand.hbm [shape: f32[2,4], index: 2, kind: input, shape index: {}]
  %s3 = inlined_call_operand.vmem [shape: f32[4,128], index: 3, kind: input, shape index: {}]
  %s4 = inlined_call_operand.vmem [shape: f32[1,128], index: 4, kind: input, shape index: {}]
  %s5 = inlined_call_operand.hbm [shape: f32[2,128], index: 5, kind: output, shape index: {}]
  %s6 = sld [smem:[#allocation0]]
  $region38: #{tpu_custom_call.1} parent=0
    _
  %s8 = ssub.s32 1, %s6
  %s9 = scalar_select 0, %s8, %s6
  $region1: #{tpu_custom_call.1} parent=0
    #allocation2 [shape = 'u8[4096]{0}', space=vmem, size = 0x1000, scoped, tag = 'input window, operand 0, single buffered']
    #allocation3 [shape = 's32[1]{0}', space=sflag, size = 0x4, scoped, tag = 'scoped memory for tpu_custom_call.1']
    #allocation4 [shape = 's32[1]{0}', space=sflag, size = 0x4, scoped, tag = 'scoped memory for tpu_custom_call.1']
    #allocation5 [shape = 'u8[4096]{0}', space=vmem, size = 0x1000, scoped, tag = 'input window, operand 2, single buffered']
    #allocation6 [shape = 's32[1]{0}', space=sflag, size = 0x4, scoped, tag = 'scoped memory for tpu_custom_call.1']
    #allocation7 [shape = 'u8[4096]{0}', space=vmem, size = 0x1000, scoped, tag = 'output window, operand 0, single buffered']
    %10 = vsyncpa [#allocation3], 0
    %11 = vsyncpa [#allocation6], 0
    %12 = vsyncpa [#allocation4], 0
    // Predicated region
    $region2: #{tpu_custom_call.1} parent=1 // pred_check
      _
    $region3: #{tpu_custom_call.1} parent=1 // pred_check_branch
      %14 = sbr.rel (0) target = $region5
    $region4: #{tpu_custom_call.1} parent=1 // pred_region
      %s16 = ssub.s32 128, 32
      %17 = vsyncadd [#allocation3], %s16
      %s18 = sshll.u32 [#allocation2], 4
      %s19 = int_to_ptr.vmem [resolvable:$true] %s18
      %24 = dma.hbm_to_vmem [thread:$0]  %s0, 32, %s19, [#allocation3], 32, 32, 2
    $region5: #{tpu_custom_call.1} parent=1 // pred_fallthru
      _
    // Predicated region
    $region6: #{tpu_custom_call.1} parent=1 // pred_check
      _
    $region7: #{tpu_custom_call.1} parent=1 // pred_check_branch
      %26 = sbr.rel (0) target = $region9
    $region8: #{tpu_custom_call.1} parent=1 // pred_region
      _
    $region9: #{tpu_custom_call.1} parent=1 // pred_fallthru
      _
    // Predicated region
    $region10: #{tpu_custom_call.1} parent=1 // pred_check
      _
    $region11: #{tpu_custom_call.1} parent=1 // pred_check_branch
      %28 = sbr.rel (0) target = $region13
    $region12: #{tpu_custom_call.1} parent=1 // pred_region
      %s30 = ssub.s32 128, 32
      %31 = vsyncadd [#allocation6], %s30
      %s32 = sshll.u32 [#allocation5], 4
      %s33 = int_to_ptr.vmem [resolvable:$true] %s32
      %38 = dma.hbm_to_vmem [thread:$0]  %s2, 32, %s33, [#allocation6], 32, 32, 2
    $region13: #{tpu_custom_call.1} parent=1 // pred_fallthru
      _
    // Predicated region
    $region14: #{tpu_custom_call.1} parent=1 // pred_check
      _
    $region15: #{tpu_custom_call.1} parent=1 // pred_check_branch
      %40 = sbr.rel (0) target = $region17
    $region16: #{tpu_custom_call.1} parent=1 // pred_region
      _
    $region17: #{tpu_custom_call.1} parent=1 // pred_fallthru
      _
    // Predicated region
    $region18: #{tpu_custom_call.1} parent=1 // pred_check
      _
    $region19: #{tpu_custom_call.1} parent=1 // pred_check_branch
      %42 = sbr.rel (0) target = $region21
    $region20: #{tpu_custom_call.1} parent=1 // pred_region
      _
    $region21: #{tpu_custom_call.1} parent=1 // pred_fallthru
      _
    // Predicated region
    $region22: #{tpu_custom_call.1} parent=1 // pred_check
      _
    $region23: #{tpu_custom_call.1} parent=1 // pred_check_branch
      %44 = sbr.rel (0) target = $region25
    $region24: #{tpu_custom_call.1} parent=1 // pred_region
      %45 = dma.done [#allocation3], 128
    $region25: #{tpu_custom_call.1} parent=1 // pred_fallthru
      _
    // Predicated region
    $region26: #{tpu_custom_call.1} parent=1 // pred_check
      _
    $region27: #{tpu_custom_call.1} parent=1 // pred_check_branch
      %47 = sbr.rel (0) target = $region29
    $region28: #{tpu_custom_call.1} parent=1 // pred_region
      %48 = dma.done [#allocation6], 128
    $region29: #{tpu_custom_call.1} parent=1 // pred_fallthru
      _
    %v49 = vld [vmem:[#allocation2] sm:$0xff]
    %v50 = vld [vmem:[#allocation5] sm:$0xff]
    %v51 = vld [vmem:[%s1] sm:$0xff]
    %v52 = vsub.f32 %v50, %v51
    %v53 = vadd.f32 %v50, 1.0
    %v54 = vrcp.pop %v53
    %v55 = vmul.f32 %v52, %v54
    %v56 = vld [vmem:[%s3] sm:$0xf]
    %v57 = vld [vmem:[%s4] sm:$0x1]
    %v59 = vlaneseq
    %v60 = vshrl.u32 %v59, 7
    %v61 = vsub.s32 0, %v60
    %v62 = vrot.slane %v57, %v61
    %vm64 = vcmask 31744
    %v66 = vsel %vm64, %v55, 0
    %vm68 = vcmask 1043456
    %v70 = vsel %vm68, %v56, 0
    %72 = vmatprep.subr.mxu0 0.0
    %73 = vmatpush1.msra.mxu0 %v70
    %74 = vmatprep.subr.mxu0 0.0
    %75 = vmatpush1.msra.mxu0 0.0
    %76 = vmatprep.subr.mxu0 0.0
    %77 = vmatpush1.msra.mxu0 0.0
    %78 = vmatprep.subr.mxu0 0.0
    %79 = vmatpush1.msra.mxu0 0.0
    %80 = vmatprep.subr.mxu0 0.0
    %81 = vmatpush1.msra.mxu0 0.0
    %82 = vmatprep.subr.mxu0 0.0
    %83 = vmatpush1.msra.mxu0 0.0
    %84 = vmatprep.subr.mxu0 0.0
    %85 = vmatpush1.msra.mxu0 0.0
    %86 = vmatprep.subr.mxu0 0.0
    %87 = vmatpush1.msra.mxu0 0.0
    %88 = vmatprep.subr.mxu0 0.0
    %89 = vmatpush1.msra.mxu0 0.0
    %90 = vmatprep.subr.mxu0 0.0
    %91 = vmatpush1.msra.mxu0 0.0
    %92 = vmatprep.subr.mxu0 0.0
    %93 = vmatpush1.msra.mxu0 0.0
    %94 = vmatprep.subr.mxu0 0.0
    %95 = vmatpush1.msra.mxu0 0.0
    %96 = vmatprep.subr.mxu0 0.0
    %97 = vmatpush1.msra.mxu0 0.0
    %98 = vmatprep.subr.mxu0 0.0
    %99 = vmatpush1.msra.mxu0 0.0
    %100 = vmatprep.subr.mxu0 0.0
    %101 = vmatpush1.msra.mxu0 0.0
    %102 = vmatprep.subr.mxu0 0.0
    %103 = vmatpush1.msra.mxu0 0.0
    %104 = vmatprep.subr.mxu0 0.0
    %105 = vmatpush1.msra.mxu0 0.0
    %106 = vmatprep.subr.mxu0 0.0
    %107 = vmatpush1.msra.mxu0 0.0
    %108 = vmatprep.subr.mxu0 0.0
    %109 = vmatpush1.msra.mxu0 0.0
    %110 = vmatprep.subr.mxu0 0.0
    %111 = vmatpush1.msra.mxu0 0.0
    %112 = vmatprep.subr.mxu0 0.0
    %113 = vmatpush1.msra.mxu0 0.0
    %114 = vmatprep.subr.mxu0 0.0
    %115 = vmatpush1.msra.mxu0 0.0
    %116 = vmatprep.subr.mxu0 0.0
    %117 = vmatpush1.msra.mxu0 0.0
    %118 = vmatprep.subr.mxu0 0.0
    %119 = vmatpush1.msra.mxu0 0.0
    %120 = vmatprep.subr.mxu0 0.0
    %121 = vmatpush1.msra.mxu0 0.0
    %122 = vmatprep.subr.mxu0 0.0
    %123 = vmatpush1.msra.mxu0 0.0
    %124 = vmatprep.subr.mxu0 0.0
    %125 = vmatpush1.msra.mxu0 0.0
    %126 = vmatprep.subr.mxu0 0.0
    %127 = vmatpush1.msra.mxu0 0.0
    %128 = vmatprep.subr.mxu0 0.0
    %129 = vmatpush1.msra.mxu0 0.0
    %130 = vmatprep.subr.mxu0 0.0
    %131 = vmatpush1.msra.mxu0 0.0
    %132 = vmatprep.subr.mxu0 0.0
    %133 = vmatpush1.msra.mxu0 0.0
    %134 = vmatprep.subr.mxu0 0.0
    %135 = vmatpush1.msra.mxu0 0.0
    %136 = vmatprep.mubr.f32.mxu0 0.0
    %137 = vmatmul.mubr.f32.gmra.mrb[0].mxu0 %v66
    %v138 = vpop.f32.mrb[0].mxu0
    %v139 = vadd.f32 %v62, %v138
    %v140 = vpop.f32.mrb[0].mxu0
    %141 = vdwg.mxu0
    %v142 = vmul.f32 %v49, %v139
    %143 = vst [vmem:[#allocation7] sm:$0xff] %v142
    // Predicated region
    $region30: #{tpu_custom_call.1} parent=1 // pred_check
      _
    $region31: #{tpu_custom_call.1} parent=1 // pred_check_branch
      %145 = sbr.rel (0) target = $region33
    $region32: #{tpu_custom_call.1} parent=1 // pred_region
      %s147 = ssub.s32 128, 32
      %148 = vsyncadd [#allocation4], %s147
      %s149 = sshll.u32 [#allocation7], 4
      %s150 = int_to_ptr.vmem [resolvable:$true] %s149
      %155 = dma.vmem_to_hbm [thread:$0]  %s150, 32, %s5, [#allocation4], 32, 32, 2
    $region33: #{tpu_custom_call.1} parent=1 // pred_fallthru
      _
    // Predicated region
    $region34: #{tpu_custom_call.1} parent=1 // pred_check
      _
    $region35: #{tpu_custom_call.1} parent=1 // pred_check_branch
      %157 = sbr.rel (0) target = $region37
    $region36: #{tpu_custom_call.1} parent=1 // pred_region
      %158 = dma.done [#allocation4], 128
    $region37: #{tpu_custom_call.1} parent=1 // pred_fallthru
      _
    %159 = vsyncpa [#allocation3], 1
    %160 = vsyncpa [#allocation6], 1
    %161 = vsyncpa [#allocation4], 1

</llo_original>
